<compile_context>
chip_gen: v7x
topology: tpu7x:2x2x1
jax: 0.10.0
libtpu: 0.0.40
codegen_flags: <defaults>
</compile_context>

<pallas_src>
import jax
import jax.numpy as jnp
from jax.experimental import pallas as pl
from jax.experimental.pallas import tpu as pltpu


def _edm_forward_kernel(in_fac_ref, f_fac_ref, pred_ref, in_ref, out_ref):
    # in_fac_ref / f_fac_ref: (TR, 1) f32 per-row factors, broadcast over lanes.
    # Body is 2 vld + ~2 VALU + 1 vst per vreg -> hidden under the HBM DMA
    # stream on all generations; intentionally not micro-optimized further.
    out_ref[...] = (in_fac_ref[...] * in_ref[...]
                    + f_fac_ref[...] * pred_ref[...]).astype(out_ref.dtype)


def _ceil_div(a, b):
    return -(-a // b)


def _round_up(a, m):
    return _ceil_div(a, m) * m


def _choose_lanes(M):
    """Widest lane count (<=2048) dividing the per-batch feature size, or None."""
    for cand in (2048, 1024, 512, 256, 128):
        if M % cand == 0:
            return cand
    return None


def _choose_row_tile(n_rows, lanes, itemsize, sub, target_bytes=2 << 20):
    """Sublane-aligned row tile TR for an (n_rows, lanes) slab.

    ~2 MiB per operand tile: large enough that the ~0.35us fixed per-step
    overhead is amortized even at v7x's ~3.2 TB/s HBM, small enough that
    3 operands x 2 pipeline buffers stays well inside v5e's scoped VMEM.
    """
    target_rows = max(sub, (target_bytes // (lanes * itemsize)) // sub * sub)
    if n_rows <= target_rows:
        if n_rows >= 2 * sub:
            # Split into (at least) 2 blocks so both v7x TensorCores get work.
            tr = _round_up(_ceil_div(n_rows, 2), sub)
        else:
            tr = n_rows  # full-extent block (legal even if not a multiple of 8)
    else:
        tr = target_rows
        nb = _ceil_div(n_rows, tr)
        if nb % 2:
            # Best-effort even block count for v7x megacore sharding.
            cand = _round_up(_ceil_div(n_rows, nb + 1), sub)
            if cand >= sub and _ceil_div(n_rows, cand) % 2 == 0:
                tr = cand
    return tr, _ceil_div(n_rows, tr)


def _per_batch_factors(alpha, gamma, sigma_data, B):
    alpha_s = jnp.asarray(alpha, jnp.float32).reshape(B)
    gamma_s = jnp.asarray(gamma, jnp.float32).reshape(B)
    sd = jnp.float32(sigma_data)
    sigma_tilde = jnp.exp(-0.5 * gamma_s)
    denom = sigma_tilde * sigma_tilde + sd * sd
    in_fac = sd * sd * alpha_s / denom
    f_fac = sigma_tilde * sd / jnp.sqrt(denom)
    return in_fac, f_fac


def edm_forward(prediction, in_data, alpha, sigma, gamma, *, sigma_data=1.0):
    """Pallas implementation of EDMParam.forward.

    prediction, in_data : (B, ...) tensors (e.g. (B, C, H, W))
    alpha, sigma, gamma : per-batch scalars, shape (B,) or (B, 1, 1, 1)
    """
    del sigma  # not used in forward(), matching the PyTorch module
    B = prediction.shape[0]
    M = int(prediction.size) // B
    dtype = prediction.dtype
    itemsize = jnp.dtype(dtype).itemsize

    in_fac, f_fac = _per_batch_factors(alpha, gamma, sigma_data, B)

    lanes = _choose_lanes(M)
    if lanes is None:
        # Per-batch feature size not a multiple of 128: fall back to the
        # (XLA-fused) elementwise expression rather than relayouting in HBM.
        shape = (B,) + (1,) * (prediction.ndim - 1)
        out = (in_fac.reshape(shape).astype(jnp.float32) * in_data
               + f_fac.reshape(shape).astype(jnp.float32) * prediction)
        return out.astype(dtype)

    R = M // lanes              # rows per batch element
    n_rows = B * R              # total rows of the flattened slab

    # Sublane pack size per dtype: f32 -> 8, bf16/f16 -> 16, int8/fp8 -> 32.
    sub = {4: 8, 2: 16, 1: 32}.get(itemsize, 8)
    TR, n_blocks = _choose_row_tile(n_rows, lanes, itemsize, sub)

    pred2 = prediction.reshape(n_rows, lanes)
    in2 = in_data.reshape(n_rows, lanes)

    # Per-row factor columns (tiny), batch-major to match the row layout.
    in_fac_rows = jnp.repeat(in_fac, R).reshape(n_rows, 1)
    f_fac_rows = jnp.repeat(f_fac, R).reshape(n_rows, 1)

    total_bytes = 3 * n_rows * lanes * itemsize + 2 * n_rows * 4

    out = pl.pallas_call(
        _edm_forward_kernel,
        out_shape=jax.ShapeDtypeStruct((n_rows, lanes), dtype),
        grid=(n_blocks,),
        in_specs=[
            pl.BlockSpec((TR, 1), lambda i: (i, 0)),       # in_data_factor rows
            pl.BlockSpec((TR, 1), lambda i: (i, 0)),       # f_factor rows
            pl.BlockSpec((TR, lanes), lambda i: (i, 0)),   # prediction
            pl.BlockSpec((TR, lanes), lambda i: (i, 0)),   # in_data
        ],
        out_specs=pl.BlockSpec((TR, lanes), lambda i: (i, 0)),
        compiler_params=pltpu.CompilerParams(
            dimension_semantics=("parallel",),
            vmem_limit_bytes=32 * 1024 * 1024,
        ),
        cost_estimate=pl.CostEstimate(
            flops=2 * n_rows * lanes,
            transcendentals=0,
            bytes_accessed=total_bytes,
        ),
    )(in_fac_rows, f_fac_rows, pred2, in2)

    return out.reshape(prediction.shape)


def _edm_forward_ref(prediction, in_data, alpha, sigma, gamma, *, sigma_data=1.0):
    """Pure-JAX reference mirroring the PyTorch module exactly."""
    del sigma
    sigma_tilde = jnp.exp(-0.5 * gamma)
    denom = sigma_tilde ** 2 + sigma_data ** 2
    in_data_factor = sigma_data ** 2 * alpha / denom
    f_factor = sigma_tilde * sigma_data / jnp.sqrt(denom)
    return in_data_factor * in_data + f_factor * prediction


if __name__ == "__main__":
    key = jax.random.PRNGKey(0)
    k1, k2, k3, k4 = jax.random.split(key, 4)

    B, C, H, W = 2, 4, 16, 16
    prediction = jax.random.normal(k1, (B, C, H, W), jnp.float32)
    in_data = jax.random.normal(k2, (B, C, H, W), jnp.float32)
    gamma = jax.random.normal(k3, (B, 1, 1, 1), jnp.float32)
    alpha = jax.nn.sigmoid(jax.random.normal(k4, (B, 1, 1, 1), jnp.float32))
    sigma = jnp.sqrt(1.0 - alpha ** 2)  # unused by forward, kept for parity

    sigma_data = 1.0

    out = edm_forward(prediction, in_data, alpha, sigma, gamma,
                      sigma_data=sigma_data)
    out = jax.block_until_ready(out)

    ref = _edm_forward_ref(prediction, in_data, alpha, sigma, gamma,
                           sigma_data=sigma_data)
    assert out.shape == ref.shape and out.dtype == ref.dtype
    assert jnp.allclose(out, ref, atol=1e-5, rtol=1e-5), "mismatch vs reference"

    print("KERNEL_OK")
</pallas_src>

<mosaic_0001>
module attributes {stable_mosaic.version = 11 : i64} {
  func.func @_edm_forward_kernel(%arg0: i32, %arg1: memref<2x1xf32, #tpu.memory_space<vmem>>, %arg2: memref<2x1xf32, #tpu.memory_space<vmem>>, %arg3: memref<2x1024xf32, #tpu.memory_space<vmem>>, %arg4: memref<2x1024xf32, #tpu.memory_space<vmem>>, %arg5: memref<2x1024xf32, #tpu.memory_space<vmem>>) attributes {dimension_semantics = [#tpu.dimension_semantics<parallel>], iteration_bounds = array<i64: 1>, scalar_prefetch = 0 : i64, scratch_operands = 0 : i64, tpu.core_type = #tpu.core_type<tc>, window_params = [{transform_indices = @transform_0, window_bounds = array<i64: 2, 1>}, {transform_indices = @transform_1, window_bounds = array<i64: 2, 1>}, {transform_indices = @transform_2, window_bounds = array<i64: 2, 1024>}, {transform_indices = @transform_3, window_bounds = array<i64: 2, 1024>}, {transform_indices = @transform_4, window_bounds = array<i64: 2, 1024>}]} {
    %c0 = arith.constant 0 : index
    %c0_0 = arith.constant 0 : index
    %0 = vector.load %arg1[%c0, %c0_0] : memref<2x1xf32, #tpu.memory_space<vmem>>, vector<2x1xf32>
    %c0_1 = arith.constant 0 : index
    %c0_2 = arith.constant 0 : index
    %1 = vector.load %arg4[%c0_1, %c0_2] : memref<2x1024xf32, #tpu.memory_space<vmem>>, vector<2x1024xf32>
    %2 = vector.broadcast %0 : vector<2x1xf32> to vector<2x1024xf32>
    %3 = arith.mulf %2, %1 : vector<2x1024xf32>
    %c0_3 = arith.constant 0 : index
    %c0_4 = arith.constant 0 : index
    %4 = vector.load %arg2[%c0_3, %c0_4] : memref<2x1xf32, #tpu.memory_space<vmem>>, vector<2x1xf32>
    %c0_5 = arith.constant 0 : index
    %c0_6 = arith.constant 0 : index
    %5 = vector.load %arg3[%c0_5, %c0_6] : memref<2x1024xf32, #tpu.memory_space<vmem>>, vector<2x1024xf32>
    %6 = vector.broadcast %4 : vector<2x1xf32> to vector<2x1024xf32>
    %7 = arith.mulf %6, %5 : vector<2x1024xf32>
    %8 = arith.addf %3, %7 : vector<2x1024xf32>
    %c0_7 = arith.constant 0 : index
    %c0_8 = arith.constant 0 : index
    %9 = vector.load %arg5[%c0_7, %c0_8] : memref<2x1024xf32, #tpu.memory_space<vmem>>, vector<2x1024xf32>
    tpu.vector_store %arg5[%c0_7, %c0_8], %8 {strides = array<i32>} : memref<2x1024xf32, #tpu.memory_space<vmem>>, vector<2x1024xf32>,
    return
  }
  func.func @transform_0(%arg0: i32) -> (i32, i32) {
    %c0_i32 = arith.constant 0 : i32
    %c0_i32_0 = arith.constant 0 : i32
    return %arg0, %c0_i32 : i32, i32
  }
  func.func @transform_1(%arg0: i32) -> (i32, i32) {
    %c0_i32 = arith.constant 0 : i32
    %c0_i32_0 = arith.constant 0 : i32
    return %arg0, %c0_i32 : i32, i32
  }
  func.func @transform_2(%arg0: i32) -> (i32, i32) {
    %c0_i32 = arith.constant 0 : i32
    %c0_i32_0 = arith.constant 0 : i32
    return %arg0, %c0_i32 : i32, i32
  }
  func.func @transform_3(%arg0: i32) -> (i32, i32) {
    %c0_i32 = arith.constant 0 : i32
    %c0_i32_0 = arith.constant 0 : i32
    return %arg0, %c0_i32 : i32, i32
  }
  func.func @transform_4(%arg0: i32) -> (i32, i32) {
    %c0_i32 = arith.constant 0 : i32
    %c0_i32_0 = arith.constant 0 : i32
    return %arg0, %c0_i32 : i32, i32
  }
}

</mosaic_0001>

<llo_original>
// kernel: tpu_custom_call.1
$region0: #{tpu_custom_call.1}
  #allocation0 [shape = 'u32[]', space=smem, size = 0x4, offset = 0x4, fixed_abs, tag = 'smem constant byte address 0x4 - core index']
  #allocation1 [shape = 'u32[144,128]{1,0:T(1,128)}', space=vmem, size = 0x12000, scoped, tag = 'internal scratch']
  %s0 = inlined_call_operand.vmem [shape: f32[2,1], index: 0, kind: input, shape index: {}]
  %s1 = inlined_call_operand.vmem [shape: f32[2,1], index: 1, kind: input, shape index: {}]
  %s2 = inlined_call_operand.hbm [shape: f32[2,1024], index: 2, kind: input, shape index: {}]
  %s3 = inlined_call_operand.vmem [shape: f32[2,1024], index: 3, kind: input, shape index: {}]
  %s4 = inlined_call_operand.hbm [shape: f32[2,1024], index: 4, kind: output, shape index: {}]
  %s5 = sld [smem:[#allocation0]]
  $region30: #{tpu_custom_call.1} parent=0
    _
  %s7 = ssub.s32 1, %s5
  %s8 = scalar_select 0, %s7, %s5
  $region1: #{tpu_custom_call.1} parent=0
    #allocation2 [shape = 'u8[8192]{0}', space=vmem, size = 0x2000, scoped, tag = 'input window, operand 2, single buffered']
    #allocation3 [shape = 's32[1]{0}', space=sflag, size = 0x4, scoped, tag = 'scoped memory for tpu_custom_call.1']
    #allocation4 [shape = 's32[1]{0}', space=sflag, size = 0x4, scoped, tag = 'scoped memory for tpu_custom_call.1']
    #allocation5 [shape = 'u8[8192]{0}', space=vmem, size = 0x2000, scoped, tag = 'output window, operand 0, single buffered']
    %9 = vsyncpa [#allocation3], 0
    %10 = vsyncpa [#allocation4], 0
    // Predicated region
    $region2: #{tpu_custom_call.1} parent=1 // pred_check
      _
    $region3: #{tpu_custom_call.1} parent=1 // pred_check_branch
      %12 = sbr.rel (0) target = $region5
    $region4: #{tpu_custom_call.1} parent=1 // pred_region
      _
    $region5: #{tpu_custom_call.1} parent=1 // pred_fallthru
      _
    // Predicated region
    $region6: #{tpu_custom_call.1} parent=1 // pred_check
      _
    $region7: #{tpu_custom_call.1} parent=1 // pred_check_branch
      %14 = sbr.rel (0) target = $region9
    $region8: #{tpu_custom_call.1} parent=1 // pred_region
      _
    $region9: #{tpu_custom_call.1} parent=1 // pred_fallthru
      _
    // Predicated region
    $region10: #{tpu_custom_call.1} parent=1 // pred_check
      _
    $region11: #{tpu_custom_call.1} parent=1 // pred_check_branch
      %16 = sbr.rel (0) target = $region13
    $region12: #{tpu_custom_call.1} parent=1 // pred_region
      %s18 = ssub.s32 256, 256
      %19 = vsyncadd [#allocation3], %s18
      %s21 = sshll.u32 [#allocation2], 4
      %s22 = int_to_ptr.vmem [resolvable:$true] %s21
      %24 = dma.hbm_to_vmem [thread:$0]  %s2, 256, %s22, [#allocation3]
    $region13: #{tpu_custom_call.1} parent=1 // pred_fallthru
      _
    // Predicated region
    $region14: #{tpu_custom_call.1} parent=1 // pred_check
      _
    $region15: #{tpu_custom_call.1} parent=1 // pred_check_branch
      %26 = sbr.rel (0) target = $region17
    $region16: #{tpu_custom_call.1} parent=1 // pred_region
      _
    $region17: #{tpu_custom_call.1} parent=1 // pred_fallthru
      _
    // Predicated region
    $region18: #{tpu_custom_call.1} parent=1 // pred_check
      _
    $region19: #{tpu_custom_call.1} parent=1 // pred_check_branch
      %28 = sbr.rel (0) target = $region21
    $region20: #{tpu_custom_call.1} parent=1 // pred_region
      %29 = dma.done [#allocation3], 256
    $region21: #{tpu_custom_call.1} parent=1 // pred_fallthru
      _
    %v30 = vld [vmem:[%s0] sm:$0x3]
    %v31 = vld [vmem:[%s3] sm:$0xff]
    %v32 = vld [vmem:[%s3 + $0x8] sm:$0xff]
    %34 = vset.pattern.permute.xlu0 0
    %35 = vperm.xlu0 %34, %v30
    %v36 = vpop.permute.xlu0 %35
    %v40 = vcombine.high %v31, %v31
    %v42 = vunpack.c.l.s4 1983009808
    %v43 = vunpack.c.0.s8 %v42
    %v44 = vlaneseq
    %v45 = vshrl.u32 %v44, 7
    %v46 = vsub.s32 %v43, %v45
    %v47 = vrot.slane %v31, %v46
    %v49 = vunpack.c.l.s4 1983009808
    %v50 = vunpack.c.0.s8 %v49
    %v51 = vlaneseq
    %v52 = vshrl.u32 %v51, 7
    %v53 = vsub.s32 %v50, %v52
    %v54 = vrot.slane %v40, %v53
    %v55 = vcombine.high %v47, %v47
    %v56 = vcombine.high %v54, %v54
    %v57 = vcombine.high %v32, %v32
    %v59 = vunpack.c.l.s4 1983009808
    %v60 = vunpack.c.0.s8 %v59
    %v61 = vlaneseq
    %v62 = vshrl.u32 %v61, 7
    %v63 = vsub.s32 %v60, %v62
    %v64 = vrot.slane %v32, %v63
    %v66 = vunpack.c.l.s4 1983009808
    %v67 = vunpack.c.0.s8 %v66
    %v68 = vlaneseq
    %v69 = vshrl.u32 %v68, 7
    %v70 = vsub.s32 %v67, %v69
    %v71 = vrot.slane %v57, %v70
    %v72 = vcombine.high %v64, %v64
    %v73 = vcombine.high %v71, %v71
    %v82 = vmul.f32 %v36, %v47
    %v83 = vmul.f32 %v36, %v55
    %v84 = vmul.f32 %v36, %v54
    %v85 = vmul.f32 %v36, %v56
    %v86 = vmul.f32 %v36, %v64
    %v87 = vmul.f32 %v36, %v72
    %v88 = vmul.f32 %v36, %v71
    %v89 = vmul.f32 %v36, %v73
    %v90 = vld [vmem:[%s1] sm:$0x3]
    %v91 = vld [vmem:[#allocation2] sm:$0xff]
    %v92 = vld [vmem:[#allocation2 + $0x8] sm:$0xff]
    %94 = vset.pattern.permute.xlu0 0
    %95 = vperm.xlu0 %94, %v90
    %v96 = vpop.permute.xlu0 %95
    %v100 = vcombine.high %v91, %v91
    %v102 = vunpack.c.l.s4 1983009808
    %v103 = vunpack.c.0.s8 %v102
    %v104 = vlaneseq
    %v105 = vshrl.u32 %v104, 7
    %v106 = vsub.s32 %v103, %v105
    %v107 = vrot.slane %v91, %v106
    %v109 = vunpack.c.l.s4 1983009808
    %v110 = vunpack.c.0.s8 %v109
    %v111 = vlaneseq
    %v112 = vshrl.u32 %v111, 7
    %v113 = vsub.s32 %v110, %v112
    %v114 = vrot.slane %v100, %v113
    %v115 = vcombine.high %v107, %v107
    %v116 = vcombine.high %v114, %v114
    %v117 = vcombine.high %v92, %v92
    %v119 = vunpack.c.l.s4 1983009808
    %v120 = vunpack.c.0.s8 %v119
    %v121 = vlaneseq
    %v122 = vshrl.u32 %v121, 7
    %v123 = vsub.s32 %v120, %v122
    %v124 = vrot.slane %v92, %v123
    %v126 = vunpack.c.l.s4 1983009808
    %v127 = vunpack.c.0.s8 %v126
    %v128 = vlaneseq
    %v129 = vshrl.u32 %v128, 7
    %v130 = vsub.s32 %v127, %v129
    %v131 = vrot.slane %v117, %v130
    %v132 = vcombine.high %v124, %v124
    %v133 = vcombine.high %v131, %v131
    %v142 = vmul.f32 %v96, %v107
    %v143 = vmul.f32 %v96, %v115
    %v144 = vmul.f32 %v96, %v114
    %v145 = vmul.f32 %v96, %v116
    %v146 = vmul.f32 %v96, %v124
    %v147 = vmul.f32 %v96, %v132
    %v148 = vmul.f32 %v96, %v131
    %v149 = vmul.f32 %v96, %v133
    %v150 = vadd.f32 %v82, %v142
    %v151 = vadd.f32 %v83, %v143
    %v152 = vadd.f32 %v84, %v144
    %v153 = vadd.f32 %v85, %v145
    %v154 = vadd.f32 %v86, %v146
    %v155 = vadd.f32 %v87, %v147
    %v156 = vadd.f32 %v88, %v148
    %v157 = vadd.f32 %v89, %v149
    %v166 = vcombine.low %v150, %v151
    %v167 = vcombine.low %v152, %v153
    %v169 = vunpack.c.l.s4 1983009808
    %v170 = vunpack.c.0.s8 %v169
    %v171 = vlaneseq
    %v172 = vshrl.u32 %v171, 7
    %v173 = vsub.s32 %v170, %v172
    %v174 = vrot.slane %v166, %v173
    %v176 = vunpack.c.l.s4 1983009808
    %v177 = vunpack.c.0.s8 %v176
    %v178 = vlaneseq
    %v179 = vshrl.u32 %v178, 7
    %v180 = vsub.s32 %v177, %v179
    %v181 = vrot.slane %v167, %v180
    %v182 = vcombine.low %v174, %v181
    %v183 = vcombine.low %v154, %v155
    %v184 = vcombine.low %v156, %v157
    %v186 = vunpack.c.l.s4 1983009808
    %v187 = vunpack.c.0.s8 %v186
    %v188 = vlaneseq
    %v189 = vshrl.u32 %v188, 7
    %v190 = vsub.s32 %v187, %v189
    %v191 = vrot.slane %v183, %v190
    %v193 = vunpack.c.l.s4 1983009808
    %v194 = vunpack.c.0.s8 %v193
    %v195 = vlaneseq
    %v196 = vshrl.u32 %v195, 7
    %v197 = vsub.s32 %v194, %v196
    %v198 = vrot.slane %v184, %v197
    %v199 = vcombine.low %v191, %v198
    %202 = vst [vmem:[#allocation5] sm:$0xff] %v182
    %203 = vst [vmem:[#allocation5 + $0x8] sm:$0xff] %v199
    // Predicated region
    $region22: #{tpu_custom_call.1} parent=1 // pred_check
      _
    $region23: #{tpu_custom_call.1} parent=1 // pred_check_branch
      %205 = sbr.rel (0) target = $region25
    $region24: #{tpu_custom_call.1} parent=1 // pred_region
      %s207 = ssub.s32 256, 256
      %208 = vsyncadd [#allocation4], %s207
      %s210 = sshll.u32 [#allocation5], 4
      %s211 = int_to_ptr.vmem [resolvable:$true] %s210
      %213 = dma.vmem_to_hbm [thread:$0]  %s211, 256, %s4, [#allocation4]
    $region25: #{tpu_custom_call.1} parent=1 // pred_fallthru
      _
    // Predicated region
    $region26: #{tpu_custom_call.1} parent=1 // pred_check
      _
    $region27: #{tpu_custom_call.1} parent=1 // pred_check_branch
      %215 = sbr.rel (0) target = $region29
    $region28: #{tpu_custom_call.1} parent=1 // pred_region
      %216 = dma.done [#allocation4], 256
    $region29: #{tpu_custom_call.1} parent=1 // pred_fallthru
      _
    %217 = vsyncpa [#allocation3], 1
    %218 = vsyncpa [#allocation4], 1

</llo_original>
